<compile_context>
chip_gen: v7x
topology: tpu7x:2x2x1
jax: 0.10.0
libtpu: 0.0.40
codegen_flags: <defaults>
</compile_context>

<pallas_src>
import math
import jax
import jax.numpy as jnp
from jax.experimental import pallas as pl
from jax.experimental.pallas import tpu as pltpu


def _round_up(a, b):
    return (a + b - 1) // b * b


def ffn_kernel(x_ref, w1_ref, b1_ref, w2_ref, b2_ref, o_ref, acc_ref):
    # x_ref:  (tm, dim_p)   bf16
    # w1_ref: (dim_p, th)   bf16      b1_ref: (1, th)    f32
    # w2_ref: (th, dim_p)   bf16      b2_ref: (1, dim_p) f32
    # o_ref:  (tm, dim_p)   f32       acc_ref: (tm, dim_p) f32 scratch
    h_idx = pl.program_id(1)
    n_h = pl.num_programs(1)

    # First matmul on the MXU (bf16 operands, f32 accumulation), bias in f32.
    h = jnp.dot(x_ref[...], w1_ref[...], preferred_element_type=jnp.float32)
    h = h + b1_ref[...]

    # Exact GELU (matches torch.nn.GELU() default, erf-based), computed in f32.
    h = 0.5 * h * (1.0 + jax.lax.erf(h * (1.0 / math.sqrt(2.0))))
    # TODO(synk): dropout omitted (eval-mode identity); use pltpu.prng_seed /
    #             pltpu.prng_random_bits with a per-tile seed if training
    #             semantics are ever required.

    # Partial contribution of this hidden-dim slice to the output.
    partial = jnp.dot(h.astype(jnp.bfloat16), w2_ref[...],
                      preferred_element_type=jnp.float32)

    @pl.when(h_idx == 0)
    def _():
        acc_ref[...] = jnp.zeros_like(acc_ref)

    acc_ref[...] += partial

    @pl.when(h_idx == n_h - 1)
    def _():
        o_ref[...] = (acc_ref[...] + b2_ref[...]).astype(o_ref.dtype)


def feed_forward_network(x, w1, b1, w2, b2, *, tm=256, th=None):
    """x: (batch, seq, dim) float32. Weights stored as (in_features, out_features).

    Computes Linear -> GELU -> Linear (dropout = identity). Returns x's shape/dtype.
    """
    batch, seq, dim = x.shape
    hidden = w1.shape[1]
    M = batch * seq

    # Lane-dense feature dims (multiples of 128). Zero padding is exact:
    # padded input/weight/bias entries are zero, GELU(0)=0, so padded
    # hidden/output columns contribute nothing and are sliced off at the end.
    dim_p = _round_up(dim, 128)
    hid_p = _round_up(hidden, 128)

    # Row tile: as large as possible up to `tm`, multiple of 8 sublanes.
    tm = max(8, min(tm, _round_up(M, 8)))
    M_p = _round_up(M, tm)

    # Hidden tile: multiple of 128, bounded so per-step VMEM stays modest.
    if th is None:
        th = min(hid_p, 512)
    th = min(_round_up(th, 128), hid_p)
    hid_p = _round_up(hid_p, th)

    x2d = jnp.pad(x.reshape(M, dim), ((0, M_p - M), (0, dim_p - dim)))
    x2d = x2d.astype(jnp.bfloat16)
    w1_p = jnp.pad(w1, ((0, dim_p - dim), (0, hid_p - hidden))).astype(jnp.bfloat16)
    b1_p = jnp.pad(b1, (0, hid_p - hidden)).reshape(1, hid_p).astype(jnp.float32)
    w2_p = jnp.pad(w2, ((0, hid_p - hidden), (0, dim_p - dim))).astype(jnp.bfloat16)
    b2_p = jnp.pad(b2, (0, dim_p - dim)).reshape(1, dim_p).astype(jnp.float32)

    # VMEM budget: double-buffered tiles + f32 accumulator, with headroom.
    bytes_per_step = (
        2 * (tm * dim_p * 2      # x tile (bf16)
             + dim_p * th * 2    # W1 block (bf16)
             + th * 4            # b1 slice (f32)
             + th * dim_p * 2    # W2 block (bf16)
             + dim_p * 4         # b2 (f32)
             + tm * dim_p * 4)   # out tile (f32)
        + tm * dim_p * 4         # accumulator scratch (f32)
    )
    vmem_limit = int(min(max(2 * bytes_per_step, 32 * 2**20), 48 * 2**20))

    out2d = pl.pallas_call(
        ffn_kernel,
        out_shape=jax.ShapeDtypeStruct((M_p, dim_p), x.dtype),
        grid_spec=pltpu.PrefetchScalarGridSpec(
            num_scalar_prefetch=0,
            grid=(M_p // tm, hid_p // th),
            in_specs=[
                pl.BlockSpec((tm, dim_p), lambda i, h: (i, 0)),   # x tile (resident over h)
                pl.BlockSpec((dim_p, th), lambda i, h: (0, h)),   # W1 slice
                pl.BlockSpec((1, th), lambda i, h: (0, h)),       # b1 slice
                pl.BlockSpec((th, dim_p), lambda i, h: (h, 0)),   # W2 slice
                pl.BlockSpec((1, dim_p), lambda i, h: (0, 0)),    # b2
            ],
            out_specs=pl.BlockSpec((tm, dim_p), lambda i, h: (i, 0)),
            scratch_shapes=[pltpu.VMEM((tm, dim_p), jnp.float32)],
        ),
        compiler_params=pltpu.CompilerParams(
            dimension_semantics=("parallel", "arbitrary"),
            vmem_limit_bytes=vmem_limit,
        ),
    )(x2d, w1_p, b1_p, w2_p, b2_p)

    return out2d[:M, :dim].reshape(batch, seq, dim)


def _init_params(key, dim, hidden):
    """Deterministic init mimicking nn.Linear's uniform ranges."""
    k1, k2, k3, k4 = jax.random.split(key, 4)
    bound1 = 1.0 / math.sqrt(dim)
    bound2 = 1.0 / math.sqrt(hidden)
    # Stored as (in_features, out_features) so the kernel computes x @ W.
    w1 = jax.random.uniform(k1, (dim, hidden), jnp.float32, -bound1, bound1)
    b1 = jax.random.uniform(k2, (hidden,), jnp.float32, -bound1, bound1)
    w2 = jax.random.uniform(k3, (hidden, dim), jnp.float32, -bound2, bound2)
    b2 = jax.random.uniform(k4, (dim,), jnp.float32, -bound2, bound2)
    return w1, b1, w2, b2


if __name__ == "__main__":
    # Small shapes consistent with the module; dim is lane-dense (128).
    batch, seq, dim = 2, 8, 128
    mlp_ratio = 4.0
    hidden = int(dim * mlp_ratio)  # 512

    key = jax.random.PRNGKey(0)
    kx, kp = jax.random.split(key)
    x = jax.random.normal(kx, (batch, seq, dim), jnp.float32)
    w1, b1, w2, b2 = _init_params(kp, dim, hidden)

    # th=256 exercises the hidden-dim accumulation path (2 H steps).
    out = feed_forward_network(x, w1, b1, w2, b2, tm=256, th=256)
    out = jax.block_until_ready(out)

    # Pure-JAX reference (dropout = identity) mirroring the bf16 operand cast
    # with f32 accumulation used on the MXU.
    def _bf(a):
        return a.astype(jnp.bfloat16).astype(jnp.float32)

    h_ref = _bf(x.reshape(-1, dim)) @ _bf(w1) + b1
    h_ref = 0.5 * h_ref * (1.0 + jax.lax.erf(h_ref / math.sqrt(2.0)))
    ref = (_bf(h_ref) @ _bf(w2) + b2).reshape(batch, seq, dim)

    assert jnp.allclose(out, ref, atol=5e-3, rtol=5e-3), "mismatch vs reference"
    print("KERNEL_OK")
</pallas_src>

<mosaic_0001>
module attributes {stable_mosaic.version = 11 : i64} {
  func.func @ffn_kernel(%arg0: i32, %arg1: i32, %arg2: memref<16x128xbf16, #tpu.memory_space<vmem>>, %arg3: memref<128x256xbf16, #tpu.memory_space<vmem>>, %arg4: memref<1x256xf32, #tpu.memory_space<vmem>>, %arg5: memref<256x128xbf16, #tpu.memory_space<vmem>>, %arg6: memref<1x128xf32, #tpu.memory_space<vmem>>, %arg7: memref<16x128xf32, #tpu.memory_space<vmem>>, %arg8: memref<16x128xf32, #tpu.memory_space<vmem>>) attributes {dimension_semantics = [#tpu.dimension_semantics<parallel>, #tpu.dimension_semantics<arbitrary>], iteration_bounds = array<i64: 1, 2>, scalar_prefetch = 0 : i64, scratch_operands = 1 : i64, tpu.core_type = #tpu.core_type<tc>, window_params = [{transform_indices = @transform_0, window_bounds = array<i64: 16, 128>}, {transform_indices = @transform_1, window_bounds = array<i64: 128, 256>}, {transform_indices = @transform_2, window_bounds = array<i64: 1, 256>}, {transform_indices = @transform_3, window_bounds = array<i64: 256, 128>}, {pipeline_mode = #tpu.pipeline_mode<synchronous>, transform_indices = @transform_4, window_bounds = array<i64: 1, 128>}, {transform_indices = @transform_5, window_bounds = array<i64: 16, 128>}]} {
    %c0 = arith.constant 0 : index
    %c0_0 = arith.constant 0 : index
    %0 = vector.load %arg2[%c0, %c0_0] : memref<16x128xbf16, #tpu.memory_space<vmem>>, vector<16x128xbf16>
    %c0_1 = arith.constant 0 : index
    %c0_2 = arith.constant 0 : index
    %1 = vector.load %arg3[%c0_1, %c0_2] : memref<128x256xbf16, #tpu.memory_space<vmem>>, vector<128x256xbf16>
    %cst = arith.constant dense<0.000000e+00> : vector<16x256xf32>
    %2 = tpu.matmul %0, %1, %cst {dimension_numbers = #tpu.dot_dimension_numbers<[1], [0], [0], [1], [0, 0, 1, 1], [], []>} : vector<16x128xbf16>, vector<128x256xbf16>, vector<16x256xf32> -> vector<16x256xf32>
    %c0_3 = arith.constant 0 : index
    %c0_4 = arith.constant 0 : index
    %3 = vector.load %arg4[%c0_3, %c0_4] : memref<1x256xf32, #tpu.memory_space<vmem>>, vector<1x256xf32>
    %4 = vector.broadcast %3 : vector<1x256xf32> to vector<16x256xf32>
    %5 = arith.addf %2, %4 : vector<16x256xf32>
    %cst_5 = arith.constant 5.000000e-01 : f32
    %6 = vector.broadcast %cst_5 : f32 to vector<16x256xf32>
    %7 = arith.mulf %6, %5 : vector<16x256xf32>
    %cst_6 = arith.constant 0.707106769 : f32
    %8 = vector.broadcast %cst_6 : f32 to vector<16x256xf32>
    %9 = arith.mulf %5, %8 : vector<16x256xf32>
    %10 = math.erf %9 : vector<16x256xf32>
    %cst_7 = arith.constant 1.000000e+00 : f32
    %11 = vector.broadcast %cst_7 : f32 to vector<16x256xf32>
    %12 = arith.addf %11, %10 : vector<16x256xf32>
    %13 = arith.mulf %7, %12 : vector<16x256xf32>
    %14 = arith.truncf %13 : vector<16x256xf32> to vector<16x256xbf16>
    %c0_8 = arith.constant 0 : index
    %c0_9 = arith.constant 0 : index
    %15 = vector.load %arg5[%c0_8, %c0_9] : memref<256x128xbf16, #tpu.memory_space<vmem>>, vector<256x128xbf16>
    %cst_10 = arith.constant dense<0.000000e+00> : vector<16x128xf32>
    %16 = tpu.matmul %14, %15, %cst_10 {dimension_numbers = #tpu.dot_dimension_numbers<[1], [0], [0], [1], [0, 0, 1, 1], [], []>} : vector<16x256xbf16>, vector<256x128xbf16>, vector<16x128xf32> -> vector<16x128xf32>
    %c0_i32 = arith.constant 0 : i32
    %17 = arith.cmpi eq, %arg1, %c0_i32 : i32
    %18 = arith.extui %17 : i1 to i32
    %c0_i32_11 = arith.constant 0 : i32
    %19 = arith.cmpi ne, %18, %c0_i32_11 : i32
    scf.if %19 {
      %cst_17 = arith.constant 0.000000e+00 : f32
      %26 = vector.broadcast %cst_17 : f32 to vector<16x128xf32>
      %c0_18 = arith.constant 0 : index
      %c0_19 = arith.constant 0 : index
      %27 = vector.load %arg8[%c0_18, %c0_19] : memref<16x128xf32, #tpu.memory_space<vmem>>, vector<16x128xf32>
      tpu.vector_store %arg8[%c0_18, %c0_19], %26 {strides = array<i32>} : memref<16x128xf32, #tpu.memory_space<vmem>>, vector<16x128xf32>,
    } else {
    }
    %c0_12 = arith.constant 0 : index
    %c0_13 = arith.constant 0 : index
    %20 = vector.load %arg8[%c0_12, %c0_13] : memref<16x128xf32, #tpu.memory_space<vmem>>, vector<16x128xf32>
    %21 = arith.addf %20, %16 : vector<16x128xf32>
    %c0_14 = arith.constant 0 : index
    %c0_15 = arith.constant 0 : index
    %22 = vector.load %arg8[%c0_14, %c0_15] : memref<16x128xf32, #tpu.memory_space<vmem>>, vector<16x128xf32>
    tpu.vector_store %arg8[%c0_14, %c0_15], %21 {strides = array<i32>} : memref<16x128xf32, #tpu.memory_space<vmem>>, vector<16x128xf32>,
    %c1_i32 = arith.constant 1 : i32
    %23 = arith.cmpi eq, %arg1, %c1_i32 : i32
    %24 = arith.extui %23 : i1 to i32
    %c0_i32_16 = arith.constant 0 : i32
    %25 = arith.cmpi ne, %24, %c0_i32_16 : i32
    scf.if %25 {
      %c0_17 = arith.constant 0 : index
      %c0_18 = arith.constant 0 : index
      %26 = vector.load %arg8[%c0_17, %c0_18] : memref<16x128xf32, #tpu.memory_space<vmem>>, vector<16x128xf32>
      %c0_19 = arith.constant 0 : index
      %c0_20 = arith.constant 0 : index
      %27 = vector.load %arg6[%c0_19, %c0_20] : memref<1x128xf32, #tpu.memory_space<vmem>>, vector<1x128xf32>
      %28 = vector.broadcast %27 : vector<1x128xf32> to vector<16x128xf32>
      %29 = arith.addf %26, %28 : vector<16x128xf32>
      %c0_21 = arith.constant 0 : index
      %c0_22 = arith.constant 0 : index
      %30 = vector.load %arg7[%c0_21, %c0_22] : memref<16x128xf32, #tpu.memory_space<vmem>>, vector<16x128xf32>
      tpu.vector_store %arg7[%c0_21, %c0_22], %29 {strides = array<i32>} : memref<16x128xf32, #tpu.memory_space<vmem>>, vector<16x128xf32>,
    } else {
    }
    return
  }
  func.func @transform_0(%arg0: i32, %arg1: i32) -> (i32, i32) {
    %c0_i32 = arith.constant 0 : i32
    %c0_i32_0 = arith.constant 0 : i32
    return %arg0, %c0_i32 : i32, i32
  }
  func.func @transform_1(%arg0: i32, %arg1: i32) -> (i32, i32) {
    %c0_i32 = arith.constant 0 : i32
    %c0_i32_0 = arith.constant 0 : i32
    return %c0_i32, %arg1 : i32, i32
  }
  func.func @transform_2(%arg0: i32, %arg1: i32) -> (i32, i32) {
    %c0_i32 = arith.constant 0 : i32
    %c0_i32_0 = arith.constant 0 : i32
    return %c0_i32, %arg1 : i32, i32
  }
  func.func @transform_3(%arg0: i32, %arg1: i32) -> (i32, i32) {
    %c0_i32 = arith.constant 0 : i32
    %c0_i32_0 = arith.constant 0 : i32
    return %arg1, %c0_i32 : i32, i32
  }
  func.func @transform_4(%arg0: i32, %arg1: i32) -> (i32, i32) {
    %c0_i32 = arith.constant 0 : i32
    %c0_i32_0 = arith.constant 0 : i32
    %c0_i32_1 = arith.constant 0 : i32
    return %c0_i32, %c0_i32_0 : i32, i32
  }
  func.func @transform_5(%arg0: i32, %arg1: i32) -> (i32, i32) {
    %c0_i32 = arith.constant 0 : i32
    %c0_i32_0 = arith.constant 0 : i32
    return %arg0, %c0_i32 : i32, i32
  }
}

</mosaic_0001>

<llo_original>
// kernel: tpu_custom_call.1
$region0: #{tpu_custom_call.1}
  #allocation0 [shape = 'u32[]', space=smem, size = 0x4, offset = 0x4, fixed_abs, tag = 'smem constant byte address 0x4 - core index']
  #allocation1 [shape = 'u32[144,128]{1,0:T(1,128)}', space=vmem, size = 0x12000, scoped, tag = 'internal scratch']
  #allocation2 [shape = 'f32[16,128]{1,0:T(8,128)}', space=vmem, size = 0x2000, scoped, tag = 'scratch operand']
  %s0 = inlined_call_operand.hbm [shape: bf16[16,128], index: 0, kind: input, shape index: {}]
  %s1 = inlined_call_operand.hbm [shape: bf16[128,512], index: 1, kind: input, shape index: {}]
  %s2 = inlined_call_operand.vmem [shape: f32[1,512], index: 2, kind: input, shape index: {}]
  %s3 = inlined_call_operand.hbm [shape: bf16[512,128], index: 3, kind: input, shape index: {}]
  %s4 = inlined_call_operand.vmem [shape: f32[1,128], index: 4, kind: input, shape index: {}]
  %s5 = inlined_call_operand.hbm [shape: f32[16,128], index: 5, kind: output, shape index: {}]
  %s6 = sld [smem:[#allocation0]]
  $region73: #{tpu_custom_call.1} parent=0
    _
  %s8 = ssub.s32 1, %s6
  %s9 = scalar_select 0, %s8, %s6
  $region1: #{tpu_custom_call.1} parent=0
    #allocation3 [shape = 'u8[4096]{0}', space=vmem, size = 0x1000, scoped, tag = 'input window, operand 0, single buffered']
    #allocation4 [shape = 's32[2]{0}', space=sflag, size = 0x8, scoped, tag = 'scoped memory for tpu_custom_call.1']
    #allocation5 [shape = 's32[2]{0}', space=sflag, size = 0x8, scoped, tag = 'scoped memory for tpu_custom_call.1']
    #allocation6 [shape = 'u8[131072]{0}', space=vmem, size = 0x20000, scoped, tag = 'input window, operand 1']
    #allocation7 [shape = 's32[2]{0}', space=sflag, size = 0x8, scoped, tag = 'scoped memory for tpu_custom_call.1']
    #allocation8 [shape = 'u8[131072]{0}', space=vmem, size = 0x20000, scoped, tag = 'input window, operand 3']
    #allocation9 [shape = 'u8[8192]{0}', space=vmem, size = 0x2000, scoped, tag = 'output window, operand 0, single buffered']
    %10 = vsyncpa [#allocation4], 0
    %11 = vsyncpa [#allocation7], 0
    %s12 = scalar_lea.sflag [#allocation7], 1
    %13 = vsyncpa %s12, 0
    %14 = vsyncpa [#allocation5], 0
    loop: start=0, step=1, limit=4
    $region2: #{tpu_custom_call.1} parent=1 // loop_pre_header
      _
    $region3: #{tpu_custom_call.1} parent=1 // loop_header
      %s16 = sphi 0, %s20
      %p17 = scmp.ge.s32.totalorder %s16, 4
      %s23 = sphi 0, %s35
      %s24 = sphi 0, %s31
      %s25 = sphi 0, %s23
      %s26 = sphi 0, %s24
      %s27 = sphi 0, %s25
      %s28 = sphi 0, %s26
      %s38 = sphi 0, %s40
      %s41 = sphi 0, %s38
      %s42 = sphi 0, %s41
      %s58 = sphi 0, %s42
      %s64 = sphi 0, %s66
      %s67 = sphi 0, %s64
      %s68 = sphi 0, %s67
      %s84 = sphi 0, %s68
      %s90 = sphi 0, %s92
      %s93 = sphi 0, %s90
      %s94 = sphi 0, %s93
      %s110 = sphi 0, %s94
      %s116 = sphi 0, %s118
      %s119 = sphi 0, %s116
      %s120 = sphi 0, %s119
      %s136 = sphi 0, %s120
      %s140 = sphi 0, %s140
      %s142 = sphi 0, %s140
      %s143 = sphi 0, %s142
      %s157 = sphi 0, %s143
      %s163 = sphi 0, %s165
      %s166 = sphi 0, %s163
      %s167 = sphi 0, %s166
      %s183 = sphi 0, %s167
    $region4: #{tpu_custom_call.1} parent=1 // loop_header_branch
      %19 = sbr.rel (%p17) target = $region8
    $region5: #{tpu_custom_call.1} parent=1 // loop_body
      %s21 = ssub.s32 %s16, 1
      %s22 = ssub.s32 %s16, 2
      %s29 = sadd.s32 1, %s24
      %p30 = scmp.ge.s32.totalorder %s29, 2
      %s31 = scalar_select %p30, 0, %s29
      %s32 = sadd.s32 1, %s23
      %s33 = scalar_select %p30, %s32, %s23
      %p34 = scmp.ge.s32.totalorder %s33, 1
      %s35 = scalar_select %p34, 0, %s33
      %s36 = ssub.s32 %s23, %s35
      %p37 = scmp.eq.s32.totalorder %s36, 0
      %s39 = sadd.s32 %s38, 1
      %s40 = scalar_select %p37, %s38, %s39
      %p43 = pneg %p37
      %p44 = scmp.eq.s32.totalorder %s16, 1
      %p45 = por %p43, %p44
      %p46 = scmp.ne.s32.totalorder %s38, %s41
      %p47 = scmp.eq.s32.totalorder %s16, 0
      %p48 = por %p46, %p47
      %p49 = scmp.ne.s32.totalorder %s38, %s41
      %p50 = scmp.eq.s32.totalorder %s21, 1
      %p51 = por %p49, %p50
      %p52 = scmp.ne.s32.totalorder %s41, %s42
      %p53 = scmp.eq.s32.totalorder %s21, 0
      %p54 = por %p52, %p53
      %p55 = scmp.ne.s32.totalorder %s41, %s42
      %p56 = scmp.eq.s32.totalorder %s22, 1
      %p57 = por %p55, %p56
      %p59 = scmp.ne.s32.totalorder %s42, %s58
      %p60 = scmp.eq.s32.totalorder %s22, 0
      %p61 = por %p59, %p60
      %s62 = ssub.s32 %s24, %s31
      %p63 = scmp.eq.s32.totalorder %s62, 0
      %s65 = sadd.s32 %s64, 1
      %s66 = scalar_select %p63, %s64, %s65
      %p69 = pneg %p63
      %p70 = scmp.eq.s32.totalorder %s16, 1
      %p71 = por %p69, %p70
      %p72 = scmp.ne.s32.totalorder %s64, %s67
      %p73 = scmp.eq.s32.totalorder %s16, 0
      %p74 = por %p72, %p73
      %p75 = scmp.ne.s32.totalorder %s64, %s67
      %p76 = scmp.eq.s32.totalorder %s21, 1
      %p77 = por %p75, %p76
      %p78 = scmp.ne.s32.totalorder %s67, %s68
      %p79 = scmp.eq.s32.totalorder %s21, 0
      %p80 = por %p78, %p79
      %p81 = scmp.ne.s32.totalorder %s67, %s68
      %p82 = scmp.eq.s32.totalorder %s22, 1
      %p83 = por %p81, %p82
      %p85 = scmp.ne.s32.totalorder %s68, %s84
      %p86 = scmp.eq.s32.totalorder %s22, 0
      %p87 = por %p85, %p86
      %s88 = ssub.s32 %s24, %s31
      %p89 = scmp.eq.s32.totalorder %s88, 0
      %s91 = sadd.s32 %s90, 1
      %s92 = scalar_select %p89, %s90, %s91
      %p95 = pneg %p89
      %p96 = scmp.eq.s32.totalorder %s16, 1
      %p97 = por %p95, %p96
      %p98 = scmp.ne.s32.totalorder %s90, %s93
      %p99 = scmp.eq.s32.totalorder %s16, 0
      %p100 = por %p98, %p99
      %p101 = scmp.ne.s32.totalorder %s90, %s93
      %p102 = scmp.eq.s32.totalorder %s21, 1
      %p103 = por %p101, %p102
      %p104 = scmp.ne.s32.totalorder %s93, %s94
      %p105 = scmp.eq.s32.totalorder %s21, 0
      %p106 = por %p104, %p105
      %p107 = scmp.ne.s32.totalorder %s93, %s94
      %p108 = scmp.eq.s32.totalorder %s22, 1
      %p109 = por %p107, %p108
      %p111 = scmp.ne.s32.totalorder %s94, %s110
      %p112 = scmp.eq.s32.totalorder %s22, 0
      %p113 = por %p111, %p112
      %s114 = ssub.s32 %s24, %s31
      %p115 = scmp.eq.s32.totalorder %s114, 0
      %s117 = sadd.s32 %s116, 1
      %s118 = scalar_select %p115, %s116, %s117
      %p121 = pneg %p115
      %p122 = scmp.eq.s32.totalorder %s16, 1
      %p123 = por %p121, %p122
      %p124 = scmp.ne.s32.totalorder %s116, %s119
      %p125 = scmp.eq.s32.totalorder %s16, 0
      %p126 = por %p124, %p125
      %p127 = scmp.ne.s32.totalorder %s116, %s119
      %p128 = scmp.eq.s32.totalorder %s21, 1
      %p129 = por %p127, %p128
      %p130 = scmp.ne.s32.totalorder %s119, %s120
      %p131 = scmp.eq.s32.totalorder %s21, 0
      %p132 = por %p130, %p131
      %p133 = scmp.ne.s32.totalorder %s119, %s120
      %p134 = scmp.eq.s32.totalorder %s22, 1
      %p135 = por %p133, %p134
      %p137 = scmp.ne.s32.totalorder %s120, %s136
      %p138 = scmp.eq.s32.totalorder %s22, 0
      %p139 = por %p137, %p138
      %s141 = sadd.s32 %s140, 1
      %p144 = scmp.eq.s32.totalorder %s16, 1
      %p145 = scmp.ne.s32.totalorder %s140, %s142
      %p146 = scmp.eq.s32.totalorder %s16, 0
      %p147 = por %p145, %p146
      %p148 = scmp.ne.s32.totalorder %s140, %s142
      %p149 = scmp.eq.s32.totalorder %s21, 1
      %p150 = por %p148, %p149
      %p151 = scmp.ne.s32.totalorder %s142, %s143
      %p152 = scmp.eq.s32.totalorder %s21, 0
      %p153 = por %p151, %p152
      %p154 = scmp.ne.s32.totalorder %s142, %s143
      %p155 = scmp.eq.s32.totalorder %s22, 1
      %p156 = por %p154, %p155
      %p158 = scmp.ne.s32.totalorder %s143, %s157
      %p159 = scmp.eq.s32.totalorder %s22, 0
      %p160 = por %p158, %p159
      %s161 = ssub.s32 %s23, %s35
      %p162 = scmp.eq.s32.totalorder %s161, 0
      %s164 = sadd.s32 %s163, 1
      %s165 = scalar_select %p162, %s163, %s164
      %p168 = pneg %p162
      %p169 = scmp.eq.s32.totalorder %s16, 1
      %p170 = por %p168, %p169
      %p171 = scmp.ne.s32.totalorder %s163, %s166
      %p172 = scmp.eq.s32.totalorder %s16, 0
      %p173 = por %p171, %p172
      %p174 = scmp.ne.s32.totalorder %s163, %s166
      %p175 = scmp.eq.s32.totalorder %s21, 1
      %p176 = por %p174, %p175
      %p177 = scmp.ne.s32.totalorder %s166, %s167
      %p178 = scmp.eq.s32.totalorder %s21, 0
      %p179 = por %p177, %p178
      %p180 = scmp.ne.s32.totalorder %s166, %s167
      %p181 = scmp.eq.s32.totalorder %s22, 1
      %p182 = por %p180, %p181
      %p184 = scmp.ne.s32.totalorder %s167, %s183
      %p185 = scmp.eq.s32.totalorder %s22, 0
      %p186 = por %p184, %p185
      %p187 = scmp.le.s32.totalorder 1, %s16
      %p188 = scmp.lt.s32.totalorder %s16, 3
      %p189 = pnand %p187, %p188
      %p190 = pneg %p189
      // Predicated region
      $region9: #{tpu_custom_call.1} parent=5 // pred_check
        _
      $region10: #{tpu_custom_call.1} parent=5 // pred_check_branch
        %192 = sbr.rel (%p189) target = $region12
      $region11: #{tpu_custom_call.1} parent=5 // pred_region
        %s193 = ssub.s32 %s16, 1
        // Predicated region
        $region13: #{tpu_custom_call.1} parent=11 // pred_check
          %p194 = pneg %p54
        $region14: #{tpu_custom_call.1} parent=11 // pred_check_branch
          %196 = sbr.rel (%p194) target = $region16
        $region15: #{tpu_custom_call.1} parent=11 // pred_region
          %s197 = smul.u32 2, %s25
          %s199 = ssub.s32 128, 128
          %200 = vsyncadd [#allocation4], %s199
          %s201 = smul.addr %s197, 64
          %s202 = scalar_lea.hbm %s0, %s201
          %s203 = sshll.u32 [#allocation3], 4
          %s204 = int_to_ptr.vmem [resolvable:$true] %s203
          %209 = dma.hbm_to_vmem [thread:$0]  %s202, 128, %s204, [#allocation4], 64, 64, 4
        $region16: #{tpu_custom_call.1} parent=11 // pred_fallthru
          _
        // Predicated region
        $region17: #{tpu_custom_call.1} parent=11 // pred_check
          %p210 = pneg %p153
        $region18: #{tpu_custom_call.1} parent=11 // pred_check_branch
          %212 = sbr.rel (%p210) target = $region20
        $region19: #{tpu_custom_call.1} parent=11 // pred_region
          _
        $region20: #{tpu_custom_call.1} parent=11 // pred_fallthru
          _
      $region12: #{tpu_custom_call.1} parent=5 // pred_fallthru
        _
      %p213 = scmp.lt.s32.totalorder %s16, 2
      // Predicated region
      $region21: #{tpu_custom_call.1} parent=5 // pred_check
        %p214 = pneg %p213
      $region22: #{tpu_custom_call.1} parent=5 // pred_check_branch
        %216 = sbr.rel (%p214) target = $region24
      $region23: #{tpu_custom_call.1} parent=5 // pred_region
        // Predicated region
        $region25: #{tpu_custom_call.1} parent=23 // pred_check
          %p217 = pneg %p74
        $region26: #{tpu_custom_call.1} parent=23 // pred_check_branch
          %219 = sbr.rel (%p217) target = $region28
        $region27: #{tpu_custom_call.1} parent=23 // pred_region
          %s220 = sand.u32 %s16, 1
          %s221 = scalar_lea.sflag [#allocation7], %s220
          %s222 = sand.u32 %s64, 1
          %s223 = smul.addr %s222, 128
          %s224 = scalar_lea.vmem [#allocation6], %s223
          %s225 = smul.u32 2, %s24
          %s227 = ssub.s32 2048, 2048
          %228 = vsyncadd %s221, %s227
          %s229 = smul.addr %s225, 64
          %s230 = scalar_lea.hbm %s1, %s229
          %s231 = sshll.u32 %s224, 4
          %s232 = int_to_ptr.vmem [resolvable:$true] %s231
          %237 = dma.hbm_to_vmem [thread:$0]  %s230, 2048, %s232, %s221, 256, 128, 8
        $region28: #{tpu_custom_call.1} parent=23 // pred_fallthru
          _
        // Predicated region
        $region29: #{tpu_custom_call.1} parent=23 // pred_check
          %p238 = pneg %p100
        $region30: #{tpu_custom_call.1} parent=23 // pred_check_branch
          %240 = sbr.rel (%p238) target = $region32
        $region31: #{tpu_custom_call.1} parent=23 // pred_region
          %s241 = smul.u32 2, %s24
          %p242 = scmp.lt.s32.totalorder %s241, 3
          %s243 = scalar_select %p242, %s241, 3
          %s244 = scalar_lea.vmem %s2, %s243
          %s245 = smul.u32 2, %s24
        $region32: #{tpu_custom_call.1} parent=23 // pred_fallthru
          _
        // Predicated region
        $region33: #{tpu_custom_call.1} parent=23 // pred_check
          %p246 = pneg %p126
        $region34: #{tpu_custom_call.1} parent=23 // pred_check_branch
          %248 = sbr.rel (%p246) target = $region36
        $region35: #{tpu_custom_call.1} parent=23 // pred_region
          %s249 = sand.u32 %s16, 1
          %s250 = scalar_lea.sflag [#allocation7], %s249
          %s251 = sand.u32 %s116, 1
          %s252 = smul.addr %s251, 128
          %s253 = scalar_lea.vmem [#allocation8], %s252
          %s254 = smul.u32 32, %s24
          %s256 = ssub.s32 2048, 2048
          %257 = vsyncadd %s250, %s256
          %s258 = smul.addr %s254, 64
          %s259 = scalar_lea.hbm %s3, %s258
          %s260 = sshll.u32 %s253, 4
          %s261 = int_to_ptr.vmem [resolvable:$true] %s260
          %266 = dma.hbm_to_vmem [thread:$0]  %s259, 2048, %s261, %s250, 64, 64, 4
        $region36: #{tpu_custom_call.1} parent=23 // pred_fallthru
          _
      $region24: #{tpu_custom_call.1} parent=5 // pred_fallthru
        _
      %p267 = scmp.le.s32.totalorder 1, %s16
      %p268 = scmp.lt.s32.totalorder %s16, 3
      %p269 = pnand %p267, %p268
      %p270 = pneg %p269
      // Predicated region
      $region37: #{tpu_custom_call.1} parent=5 // pred_check
        _
      $region38: #{tpu_custom_call.1} parent=5 // pred_check_branch
        %272 = sbr.rel (%p269) target = $region40
      $region39: #{tpu_custom_call.1} parent=5 // pred_region
        %s273 = ssub.s32 %s16, 1
        // Predicated region
        $region41: #{tpu_custom_call.1} parent=39 // pred_check
          %p274 = pneg %p54
        $region42: #{tpu_custom_call.1} parent=39 // pred_check_branch
          %276 = sbr.rel (%p274) target = $region44
        $region43: #{tpu_custom_call.1} parent=39 // pred_region
          %277 = dma.done [#allocation4], 128
        $region44: #{tpu_custom_call.1} parent=39 // pred_fallthru
          _
        %s278 = sand.u32 %s21, 1
        %s279 = scalar_lea.sflag [#allocation7], %s278
        %s280 = sand.u32 %s67, 1
        %s281 = smul.addr %s280, 128
        %s282 = scalar_lea.vmem [#allocation6], %s281
        // Predicated region
        $region45: #{tpu_custom_call.1} parent=39 // pred_check
          %p283 = pneg %p80
        $region46: #{tpu_custom_call.1} parent=39 // pred_check_branch
          %285 = sbr.rel (%p283) target = $region48
        $region47: #{tpu_custom_call.1} parent=39 // pred_region
          %286 = dma.done %s279, 2048
        $region48: #{tpu_custom_call.1} parent=39 // pred_fallthru
          _
        %s287 = sand.u32 %s21, 1
        %s288 = scalar_lea.sflag [#allocation7], %s287
        %s289 = sand.u32 %s119, 1
        %s290 = smul.addr %s289, 128
        %s291 = scalar_lea.vmem [#allocation8], %s290
        // Predicated region
        $region49: #{tpu_custom_call.1} parent=39 // pred_check
          %p292 = pneg %p132
        $region50: #{tpu_custom_call.1} parent=39 // pred_check_branch
          %294 = sbr.rel (%p292) target = $region52
        $region51: #{tpu_custom_call.1} parent=39 // pred_region
          %295 = dma.done %s288, 2048
        $region52: #{tpu_custom_call.1} parent=39 // pred_fallthru
          _
        %p296 = pneg %p54
        %p297 = pneg %p51
        %s298 = sand.u32 %s21, 1
        %s299 = scalar_lea.sflag [#allocation7], %s298
        %s300 = sand.u32 %s67, 1
        %s301 = smul.addr %s300, 128
        %s302 = scalar_lea.vmem [#allocation6], %s301
        %p303 = pneg %p80
        %p304 = pneg %p77
        %s305 = smul.u32 2, %s26
        %p306 = scmp.lt.s32.totalorder %s305, 3
        %s307 = scalar_select %p306, %s305, 3
        %s308 = scalar_lea.vmem %s2, %s307
        %p309 = pneg %p106
        %p310 = pneg %p103
        %s311 = sand.u32 %s21, 1
        %s312 = scalar_lea.sflag [#allocation7], %s311
        %s313 = sand.u32 %s119, 1
        %s314 = smul.addr %s313, 128
        %s315 = scalar_lea.vmem [#allocation8], %s314
        %p316 = pneg %p132
        %p317 = pneg %p129
        %p318 = pneg %p153
        %p319 = pneg %p150
        %p320 = pneg %p179
        %p321 = pneg %p176
        %s322 = smul.u32 2, %s25
        %s323 = smul.u32 2, %s26
        %s324 = smul.u32 2, %s26
        %p325 = scmp.lt.s32.totalorder %s324, 3
        %s326 = scalar_select %p325, %s324, 3
        %s327 = scalar_lea.vmem %s2, %s326
        %s328 = smul.u32 2, %s26
        %s329 = smul.u32 32, %s26
        %s330 = smul.u32 2, %s25
        %v332 = vld [vmem:[#allocation3] sm:$0xf]
        %v333 = vld [vmem:[#allocation3 + $0x4] sm:$0xf]
        %v334 = vld [vmem:[%s282] sm:$0xff]
        %v335 = vld [vmem:[%s282 + $0x8] sm:$0xff]
        %v336 = vld [vmem:[%s282 + $0x10] sm:$0xff]
        %v337 = vld [vmem:[%s282 + $0x18] sm:$0xff]
        %v338 = vld [vmem:[%s282 + $0x20] sm:$0xff]
        %v339 = vld [vmem:[%s282 + $0x28] sm:$0xff]
        %v340 = vld [vmem:[%s282 + $0x30] sm:$0xff]
        %v341 = vld [vmem:[%s282 + $0x38] sm:$0xff]
        %v342 = vld [vmem:[%s282 + $0x40] sm:$0xff]
        %v343 = vld [vmem:[%s282 + $0x48] sm:$0xff]
        %v344 = vld [vmem:[%s282 + $0x50] sm:$0xff]
        %v345 = vld [vmem:[%s282 + $0x58] sm:$0xff]
        %v346 = vld [vmem:[%s282 + $0x60] sm:$0xff]
        %v347 = vld [vmem:[%s282 + $0x68] sm:$0xff]
        %v348 = vld [vmem:[%s282 + $0x70] sm:$0xff]
        %v349 = vld [vmem:[%s282 + $0x78] sm:$0xff]
        %v350 = vld [vmem:[%s327] sm:$0x3]
        %v352 = vlaneseq
        %v353 = vshrl.u32 %v352, 7
        %v354 = vsub.s32 0, %v353
        %v355 = vrot.slane %v350, %v354
        %v356 = vlaneseq
        %v357 = vshrl.u32 %v356, 7
        %v358 = vsub.s32 1, %v357
        %v359 = vrot.slane %v350, %v358
        %v364 = vunpack.c.l.b16 %v332
        %v365 = vunpack.c.l.b16 %v333
        %v366 = vpack.c.b16 %v365, %v364
        %v384 = vunpack.c.l.b16 %v334
        %v385 = vunpack.c.h.b16 %v334
        %v386 = vunpack.c.l.b16 %v335
        %v387 = vunpack.c.h.b16 %v335
        %v388 = vunpack.c.l.b16 %v336
        %v389 = vunpack.c.h.b16 %v336
        %v390 = vunpack.c.l.b16 %v337
        %v391 = vunpack.c.h.b16 %v337
        %v392 = vunpack.c.l.b16 %v338
        %v393 = vunpack.c.h.b16 %v338
        %v394 = vunpack.c.l.b16 %v339
        %v395 = vunpack.c.h.b16 %v339
        %v396 = vunpack.c.l.b16 %v340
        %v397 = vunpack.c.h.b16 %v340
        %v398 = vunpack.c.l.b16 %v341
        %v399 = vunpack.c.h.b16 %v341
        %v400 = vunpack.c.l.b16 %v342
        %v401 = vunpack.c.h.b16 %v342
        %v402 = vunpack.c.l.b16 %v343
        %v403 = vunpack.c.h.b16 %v343
        %v404 = vunpack.c.l.b16 %v344
        %v405 = vunpack.c.h.b16 %v344
        %v406 = vunpack.c.l.b16 %v345
        %v407 = vunpack.c.h.b16 %v345
        %v408 = vunpack.c.l.b16 %v346
        %v409 = vunpack.c.h.b16 %v346
        %v410 = vunpack.c.l.b16 %v347
        %v411 = vunpack.c.h.b16 %v347
        %v412 = vunpack.c.l.b16 %v348
        %v413 = vunpack.c.h.b16 %v348
        %v414 = vunpack.c.l.b16 %v349
        %v415 = vunpack.c.h.b16 %v349
        %v416 = vpack.c.b16 %v386, %v384
        %v417 = vpack.c.b16 %v387, %v385
        %v418 = vpack.c.b16 %v390, %v388
        %v419 = vpack.c.b16 %v391, %v389
        %v420 = vpack.c.b16 %v394, %v392
        %v421 = vpack.c.b16 %v395, %v393
        %v422 = vpack.c.b16 %v398, %v396
        %v423 = vpack.c.b16 %v399, %v397
        %v424 = vpack.c.b16 %v402, %v400
        %v425 = vpack.c.b16 %v403, %v401
        %v426 = vpack.c.b16 %v406, %v404
        %v427 = vpack.c.b16 %v407, %v405
        %v428 = vpack.c.b16 %v410, %v408
        %v429 = vpack.c.b16 %v411, %v409
        %v430 = vpack.c.b16 %v414, %v412
        %v431 = vpack.c.b16 %v415, %v413
        %448 = vmatprep.subr.bf16.mxu0 %v417
        %449 = vmatpush1.bf16.msra.mxu0 %v416
        %450 = vmatprep.subr.bf16.mxu0 %v419
        %451 = vmatpush1.bf16.msra.mxu0 %v418
        %452 = vmatprep.subr.bf16.mxu0 %v421
        %453 = vmatpush1.bf16.msra.mxu0 %v420
        %454 = vmatprep.subr.bf16.mxu0 %v423
        %455 = vmatpush1.bf16.msra.mxu0 %v422
        %456 = vmatprep.subr.bf16.mxu0 %v425
        %457 = vmatpush1.bf16.msra.mxu0 %v424
        %458 = vmatprep.subr.bf16.mxu0 %v427
        %459 = vmatpush1.bf16.msra.mxu0 %v426
        %460 = vmatprep.subr.bf16.mxu0 %v429
        %461 = vmatpush1.bf16.msra.mxu0 %v428
        %462 = vmatprep.subr.bf16.mxu0 %v431
        %463 = vmatpush1.bf16.msra.mxu0 %v430
        %464 = vmatprep.subr.bf16.mxu0 0
        %465 = vmatpush1.bf16.msra.mxu0 0
        %466 = vmatprep.subr.bf16.mxu0 0
        %467 = vmatpush1.bf16.msra.mxu0 0
        %468 = vmatprep.subr.bf16.mxu0 0
        %469 = vmatpush1.bf16.msra.mxu0 0
        %470 = vmatprep.subr.bf16.mxu0 0
        %471 = vmatpush1.bf16.msra.mxu0 0
        %472 = vmatprep.subr.bf16.mxu0 0
        %473 = vmatpush1.bf16.msra.mxu0 0
        %474 = vmatprep.subr.bf16.mxu0 0
        %475 = vmatpush1.bf16.msra.mxu0 0
        %476 = vmatprep.subr.bf16.mxu0 0
        %477 = vmatpush1.bf16.msra.mxu0 0
        %478 = vmatprep.subr.bf16.mxu0 0
        %479 = vmatpush1.bf16.msra.mxu0 0
        %480 = vmatprep.mubr.bf16.mxu0 0
        %481 = vmatmul.mubr.bf16.gmra.mrb[0].mxu0 %v366
        %v482 = vpop.f32.mrb[0].mxu0
        %v483 = vadd.f32 %v355, %v482
        %v484 = vpop.f32.mrb[0].mxu0
        %v485 = vadd.f32 %v359, %v484
        %v486 = vpop.f32.mrb[0].mxu0
        %v487 = vadd.f32 %v355, %v486
        %v488 = vpop.f32.mrb[0].mxu0
        %v489 = vadd.f32 %v359, %v488
        %490 = vdwg.mxu0
        %v491 = vmul.f32 %v483, 0.5
        %v492 = vmul.f32 %v485, 0.5
        %v493 = vmul.f32 %v487, 0.5
        %v494 = vmul.f32 %v489, 0.5
        %v495 = vmul.f32 %v483, 0.70710677
        %v496 = vmul.f32 %v485, 0.70710677
        %v497 = vmul.f32 %v487, 0.70710677
        %v498 = vmul.f32 %v489, 0.70710677
        %v499 = verf.f32.pop %v495
        %v500 = verf.f32.pop %v496
        %v501 = verf.f32.pop %v497
        %v502 = verf.f32.pop %v498
        %v503 = vadd.f32 %v499, 1.0
        %v504 = vadd.f32 %v500, 1.0
        %v505 = vadd.f32 %v501, 1.0
        %v506 = vadd.f32 %v502, 1.0
        %v507 = vmul.f32 %v491, %v503
        %v508 = vmul.f32 %v492, %v504
        %v509 = vmul.f32 %v493, %v505
        %v510 = vmul.f32 %v494, %v506
        %v511 = vpack.c.bf16 %v509, %v507
        %v512 = vpack.c.bf16 %v510, %v508
        %v513 = vld [vmem:[%s291] sm:$0xf]
        %v514 = vld [vmem:[%s291 + $0x4] sm:$0xf]
        %v515 = vld [vmem:[%s291 + $0x8] sm:$0xf]
        %v516 = vld [vmem:[%s291 + $0xc] sm:$0xf]
        %v517 = vld [vmem:[%s291 + $0x10] sm:$0xf]
        %v518 = vld [vmem:[%s291 + $0x14] sm:$0xf]
        %v519 = vld [vmem:[%s291 + $0x18] sm:$0xf]
        %v520 = vld [vmem:[%s291 + $0x1c] sm:$0xf]
        %v521 = vld [vmem:[%s291 + $0x20] sm:$0xf]
        %v522 = vld [vmem:[%s291 + $0x24] sm:$0xf]
        %v523 = vld [vmem:[%s291 + $0x28] sm:$0xf]
        %v524 = vld [vmem:[%s291 + $0x2c] sm:$0xf]
        %v525 = vld [vmem:[%s291 + $0x30] sm:$0xf]
        %v526 = vld [vmem:[%s291 + $0x34] sm:$0xf]
        %v527 = vld [vmem:[%s291 + $0x38] sm:$0xf]
        %v528 = vld [vmem:[%s291 + $0x3c] sm:$0xf]
        %v529 = vld [vmem:[%s291 + $0x40] sm:$0xf]
        %v530 = vld [vmem:[%s291 + $0x44] sm:$0xf]
        %v531 = vld [vmem:[%s291 + $0x48] sm:$0xf]
        %v532 = vld [vmem:[%s291 + $0x4c] sm:$0xf]
        %v533 = vld [vmem:[%s291 + $0x50] sm:$0xf]
        %v534 = vld [vmem:[%s291 + $0x54] sm:$0xf]
        %v535 = vld [vmem:[%s291 + $0x58] sm:$0xf]
        %v536 = vld [vmem:[%s291 + $0x5c] sm:$0xf]
        %v537 = vld [vmem:[%s291 + $0x60] sm:$0xf]
        %v538 = vld [vmem:[%s291 + $0x64] sm:$0xf]
        %v539 = vld [vmem:[%s291 + $0x68] sm:$0xf]
        %v540 = vld [vmem:[%s291 + $0x6c] sm:$0xf]
        %v541 = vld [vmem:[%s291 + $0x70] sm:$0xf]
        %v542 = vld [vmem:[%s291 + $0x74] sm:$0xf]
        %v543 = vld [vmem:[%s291 + $0x78] sm:$0xf]
        %v544 = vld [vmem:[%s291 + $0x7c] sm:$0xf]
        %v577 = vunpack.c.l.b16 %v513
        %v578 = vunpack.c.l.b16 %v514
        %v579 = vunpack.c.l.b16 %v515
        %v580 = vunpack.c.l.b16 %v516
        %v581 = vunpack.c.l.b16 %v517
        %v582 = vunpack.c.l.b16 %v518
        %v583 = vunpack.c.l.b16 %v519
        %v584 = vunpack.c.l.b16 %v520
        %v585 = vunpack.c.l.b16 %v521
        %v586 = vunpack.c.l.b16 %v522
        %v587 = vunpack.c.l.b16 %v523
        %v588 = vunpack.c.l.b16 %v524
        %v589 = vunpack.c.l.b16 %v525
        %v590 = vunpack.c.l.b16 %v526
        %v591 = vunpack.c.l.b16 %v527
        %v592 = vunpack.c.l.b16 %v528
        %v593 = vunpack.c.l.b16 %v529
        %v594 = vunpack.c.l.b16 %v530
        %v595 = vunpack.c.l.b16 %v531
        %v596 = vunpack.c.l.b16 %v532
        %v597 = vunpack.c.l.b16 %v533
        %v598 = vunpack.c.l.b16 %v534
        %v599 = vunpack.c.l.b16 %v535
        %v600 = vunpack.c.l.b16 %v536
        %v601 = vunpack.c.l.b16 %v537
        %v602 = vunpack.c.l.b16 %v538
        %v603 = vunpack.c.l.b16 %v539
        %v604 = vunpack.c.l.b16 %v540
        %v605 = vunpack.c.l.b16 %v541
        %v606 = vunpack.c.l.b16 %v542
        %v607 = vunpack.c.l.b16 %v543
        %v608 = vunpack.c.l.b16 %v544
        %v609 = vpack.c.b16 %v578, %v577
        %v610 = vpack.c.b16 %v580, %v579
        %v611 = vpack.c.b16 %v582, %v581
        %v612 = vpack.c.b16 %v584, %v583
        %v613 = vpack.c.b16 %v586, %v585
        %v614 = vpack.c.b16 %v588, %v587
        %v615 = vpack.c.b16 %v590, %v589
        %v616 = vpack.c.b16 %v592, %v591
        %v617 = vpack.c.b16 %v594, %v593
        %v618 = vpack.c.b16 %v596, %v595
        %v619 = vpack.c.b16 %v598, %v597
        %v620 = vpack.c.b16 %v600, %v599
        %v621 = vpack.c.b16 %v602, %v601
        %v622 = vpack.c.b16 %v604, %v603
        %v623 = vpack.c.b16 %v606, %v605
        %v624 = vpack.c.b16 %v608, %v607
        %641 = vmatprep.subr.bf16.mxu0 0
        %642 = vmatpush1.bf16.msra.mxu0 %v609
        %643 = vmatprep.subr.bf16.mxu0 0
        %644 = vmatpush1.bf16.msra.mxu0 %v610
        %645 = vmatprep.subr.bf16.mxu0 0
        %646 = vmatpush1.bf16.msra.mxu0 %v611
        %647 = vmatprep.subr.bf16.mxu0 0
        %648 = vmatpush1.bf16.msra.mxu0 %v612
        %649 = vmatprep.subr.bf16.mxu0 0
        %650 = vmatpush1.bf16.msra.mxu0 %v613
        %651 = vmatprep.subr.bf16.mxu0 0
        %652 = vmatpush1.bf16.msra.mxu0 %v614
        %653 = vmatprep.subr.bf16.mxu0 0
        %654 = vmatpush1.bf16.msra.mxu0 %v615
        %655 = vmatprep.subr.bf16.mxu0 0
        %656 = vmatpush1.bf16.msra.mxu0 %v616
        %657 = vmatprep.subr.bf16.mxu0 0
        %658 = vmatpush1.bf16.msra.mxu0 %v617
        %659 = vmatprep.subr.bf16.mxu0 0
        %660 = vmatpush1.bf16.msra.mxu0 %v618
        %661 = vmatprep.subr.bf16.mxu0 0
        %662 = vmatpush1.bf16.msra.mxu0 %v619
        %663 = vmatprep.subr.bf16.mxu0 0
        %664 = vmatpush1.bf16.msra.mxu0 %v620
        %665 = vmatprep.subr.bf16.mxu0 0
        %666 = vmatpush1.bf16.msra.mxu0 %v621
        %667 = vmatprep.subr.bf16.mxu0 0
        %668 = vmatpush1.bf16.msra.mxu0 %v622
        %669 = vmatprep.subr.bf16.mxu0 0
        %670 = vmatpush1.bf16.msra.mxu0 %v623
        %671 = vmatprep.subr.bf16.mxu0 0
        %672 = vmatpush1.bf16.msra.mxu0 %v624
        %673 = vmatprep.mubr.bf16.mxu0 %v512
        %674 = vmatmul.mubr.bf16.gmra.mrb[0].mxu0 %v511
        %v675 = vpop.f32.mrb[0].mxu0
        %v676 = vadd.f32 0.0, %v675
        %v677 = vpop.f32.mrb[0].mxu0
        %v678 = vpop.f32.mrb[0].mxu0
        %v679 = vadd.f32 0.0, %v678
        %v680 = vpop.f32.mrb[0].mxu0
        %681 = vdwg.mxu0
        %p682 = scmp.eq.s32.totalorder %s26, 0
        // Predicated region
        $region53: #{tpu_custom_call.1} parent=39 // pred_check
          %p683 = pneg %p682
        $region54: #{tpu_custom_call.1} parent=39 // pred_check_branch
          %685 = sbr.rel (%p683) target = $region56
        $region55: #{tpu_custom_call.1} parent=39 // pred_region
          %686 = vst [vmem:[#allocation2] sm:$0xff] 0.0
          %687 = vst [vmem:[#allocation2 + $0x8] sm:$0xff] 0.0
        $region56: #{tpu_custom_call.1} parent=39 // pred_fallthru
          _
        %v688 = vld [vmem:[#allocation2] sm:$0xff]
        %v689 = vld [vmem:[#allocation2 + $0x8] sm:$0xff]
        %v690 = vadd.f32 %v688, %v676
        %v691 = vadd.f32 %v689, %v679
        %692 = vst [vmem:[#allocation2] sm:$0xff] %v690
        %693 = vst [vmem:[#allocation2 + $0x8] sm:$0xff] %v691
        %p694 = scmp.eq.s32.totalorder %s26, 1
        // Predicated region
        $region57: #{tpu_custom_call.1} parent=39 // pred_check
          %p695 = pneg %p694
        $region58: #{tpu_custom_call.1} parent=39 // pred_check_branch
          %697 = sbr.rel (%p695) target = $region60
        $region59: #{tpu_custom_call.1} parent=39 // pred_region
          %v698 = vld [vmem:[#allocation2] sm:$0xff]
          %v699 = vld [vmem:[#allocation2 + $0x8] sm:$0xff]
          %v700 = vld [vmem:[%s4] sm:$0x1]
          %v702 = vlaneseq
          %v703 = vshrl.u32 %v702, 7
          %v704 = vsub.s32 0, %v703
          %v705 = vrot.slane %v700, %v704
          %v707 = vadd.f32 %v698, %v705
          %v708 = vadd.f32 %v699, %v705
          %709 = vst [vmem:[#allocation9] sm:$0xff] %v707
          %710 = vst [vmem:[#allocation9 + $0x8] sm:$0xff] %v708
        $region60: #{tpu_custom_call.1} parent=39 // pred_fallthru
          _
        // Predicated region
        $region61: #{tpu_custom_call.1} parent=39 // pred_check
          %p711 = pneg %p176
        $region62: #{tpu_custom_call.1} parent=39 // pred_check_branch
          %713 = sbr.rel (%p711) target = $region64
        $region63: #{tpu_custom_call.1} parent=39 // pred_region
          %s714 = smul.u32 2, %s25
          %s716 = ssub.s32 256, 256
          %717 = vsyncadd [#allocation5], %s716
          %s718 = smul.addr %s714, 128
          %s719 = scalar_lea.hbm %s5, %s718
          %s720 = sshll.u32 [#allocation9], 4
          %s721 = int_to_ptr.vmem [resolvable:$true] %s720
          %726 = dma.vmem_to_hbm [thread:$0]  %s721, 256, %s719, [#allocation5], 128, 128, 8
        $region64: #{tpu_custom_call.1} parent=39 // pred_fallthru
          _
        // Predicated region
        $region65: #{tpu_custom_call.1} parent=39 // pred_check
          %p727 = pneg %p176
        $region66: #{tpu_custom_call.1} parent=39 // pred_check_branch
          %729 = sbr.rel (%p727) target = $region68
        $region67: #{tpu_custom_call.1} parent=39 // pred_region
          %730 = dma.done [#allocation5], 256
        $region68: #{tpu_custom_call.1} parent=39 // pred_fallthru
          _
      $region40: #{tpu_custom_call.1} parent=5 // pred_fallthru
        _
      %p731 = scmp.le.s32.totalorder 2, %s16
      // Predicated region
      $region69: #{tpu_custom_call.1} parent=5 // pred_check
        %p732 = pneg %p731
      $region70: #{tpu_custom_call.1} parent=5 // pred_check_branch
        %734 = sbr.rel (%p732) target = $region72
      $region71: #{tpu_custom_call.1} parent=5 // pred_region
        %s735 = ssub.s32 %s16, 2
      $region72: #{tpu_custom_call.1} parent=5 // pred_fallthru
        _
    $region6: #{tpu_custom_call.1} parent=1 // loop_footer
      %s20 = sadd.s32 1, %s16
    $region7: #{tpu_custom_call.1} parent=1 // loop_footer_branch
      %15 = sbr.rel target = $region3
    $region8: #{tpu_custom_call.1} parent=1 // loop_exit
      _
    %736 = vsyncpa [#allocation4], 1
    %s737 = scalar_lea.sflag [#allocation4], 1
    %738 = vsyncpa %s737, 1
    %739 = vsyncpa [#allocation7], 1
    %s740 = scalar_lea.sflag [#allocation7], 1
    %741 = vsyncpa %s740, 1
    %742 = vsyncpa [#allocation5], 1
    %s743 = scalar_lea.sflag [#allocation5], 1
    %744 = vsyncpa %s743, 1

</llo_original>
